<compile_context>
chip_gen: v7x
topology: tpu7x:2x2x1
jax: 0.10.0
libtpu: 0.0.40
codegen_flags: <defaults>
</compile_context>

<pallas_src>
import jax
import jax.numpy as jnp
from jax.experimental import pallas as pl
from jax.experimental.pallas import tpu as pltpu


_LANES = 128
_MAX_BLOCK_ROWS = 2048   # (2048,128) f32 block = 1 MiB; x2 inputs x2 buffers = 4 MiB VMEM
_MIN_BLOCK_ROWS = 256    # floor for the tiled fallback search (avoid tiny blocks)


def _powerdice_kernel(pred_ref, targ_ref, tp_ref, ss_ref):
    """Per-block partial sums: tp = sum(t*p), ss = sum((t+p)^2)."""
    y_pred = pred_ref[...].astype(jnp.float32)
    y_true = targ_ref[...].astype(jnp.float32)
    s = y_true + y_pred
    tp = jnp.sum(y_true * y_pred)   # one cross-lane reduce per (large) block
    ss = jnp.sum(s * s)
    tp_ref[...] = jnp.full(tp_ref.shape, tp, jnp.float32)
    ss_ref[...] = jnp.full(ss_ref.shape, ss, jnp.float32)


def _pick_rows_and_block(n, sublane_multiple):
    """Choose (padded_row_count, block_rows), minimizing padding / copies."""
    rows = (n + _LANES - 1) // _LANES
    if rows <= _MAX_BLOCK_ROWS:
        # Single block covering the whole (rows, 128) array: exempt from the
        # (8, 128) divisibility rule because block_shape == array shape.
        return rows, rows
    start = (_MAX_BLOCK_ROWS // sublane_multiple) * sublane_multiple
    for br in range(start, _MIN_BLOCK_ROWS - 1, -sublane_multiple):
        if rows % br == 0:
            return rows, br  # copy-free tiling: block evenly divides rows
    # TODO(synk): mask the ragged tail in-kernel (scalar-prefetched valid count)
    # instead of padding the whole array for pathological sizes.
    padded = ((rows + _MAX_BLOCK_ROWS - 1) // _MAX_BLOCK_ROWS) * _MAX_BLOCK_ROWS
    return padded, _MAX_BLOCK_ROWS


def power_dice(inputs, targets, p_value=2, smooth=10.0):
    assert p_value == 2, "kernel is specialized for p_value == 2"
    assert inputs.shape == targets.shape

    x = jnp.ravel(inputs)    # y_pred
    t = jnp.ravel(targets)   # y_true
    if not jnp.issubdtype(x.dtype, jnp.floating):
        x = x.astype(jnp.float32)
    if not jnp.issubdtype(t.dtype, jnp.floating):
        t = t.astype(jnp.float32)

    n = x.shape[0]
    itemsize = min(jnp.dtype(x.dtype).itemsize, jnp.dtype(t.dtype).itemsize)
    sublane_multiple = 8 * max(1, 4 // itemsize)   # 8 for f32, 16 for bf16, 32 for 8-bit
    rows, block_rows = _pick_rows_and_block(n, sublane_multiple)

    n_padded = rows * _LANES
    if n_padded != n:  # zero padding is neutral for p = 2
        x = jnp.pad(x, (0, n_padded - n))
        t = jnp.pad(t, (0, n_padded - n))
    x2 = x.reshape(rows, _LANES)
    t2 = t.reshape(rows, _LANES)

    num_blocks = rows // block_rows
    part_shape = jax.ShapeDtypeStruct((num_blocks, 8, _LANES), jnp.float32)

    tp_part, ss_part = pl.pallas_call(
        _powerdice_kernel,
        out_shape=(part_shape, part_shape),
        grid_spec=pltpu.PrefetchScalarGridSpec(
            num_scalar_prefetch=0,
            grid=(num_blocks,),
            in_specs=[
                pl.BlockSpec((block_rows, _LANES), lambda i: (i, 0)),
                pl.BlockSpec((block_rows, _LANES), lambda i: (i, 0)),
            ],
            out_specs=[
                pl.BlockSpec((1, 8, _LANES), lambda i: (i, 0, 0)),
                pl.BlockSpec((1, 8, _LANES), lambda i: (i, 0, 0)),
            ],
        ),
        compiler_params=pltpu.CompilerParams(
            # Independent blocks -> v7x can split them across both TensorCores.
            dimension_semantics=("parallel",),
        ),
    )(x2, t2)

    tp_total = jnp.sum(tp_part[:, 0, 0])
    ss_total = jnp.sum(ss_part[:, 0, 0])
    numerator = 2.0 * tp_total
    # sum((t+p)^2) - 2*sum(t*p) == sum(t^2) + sum(p^2)
    denominator = ss_total - numerator
    return 1.0 - (numerator + smooth) / (denominator + smooth)


def power_dice_ref(inputs, targets, p_value=2, smooth=10.0):
    y_true = jnp.ravel(targets).astype(jnp.float32)
    y_pred = jnp.ravel(inputs).astype(jnp.float32)
    numerator = jnp.sum(2.0 * y_true * y_pred)
    denominator = jnp.sum(y_true ** p_value) + jnp.sum(y_pred ** p_value)
    return 1.0 - (numerator + smooth) / (denominator + smooth)


if __name__ == "__main__":
    key = jax.random.PRNGKey(0)
    k1, k2, k3, k4 = jax.random.split(key, 4)

    # NCHW-shaped predictions (post-sigmoid-like) and binary-ish targets.
    inputs = jax.nn.sigmoid(jax.random.normal(k1, (2, 4, 16, 16), dtype=jnp.float32))
    targets = (jax.random.uniform(k2, (2, 4, 16, 16)) > 0.5).astype(jnp.float32)

    loss = jax.block_until_ready(power_dice(inputs, targets))
    ref = jax.block_until_ready(power_dice_ref(inputs, targets))
    assert jnp.allclose(loss, ref, rtol=1e-5, atol=1e-5), (loss, ref)

    # Ragged-size sanity check (exercises the zero-padding path).
    inputs_r = jax.nn.sigmoid(jax.random.normal(k3, (3, 5, 7, 11), dtype=jnp.float32))
    targets_r = (jax.random.uniform(k4, (3, 5, 7, 11)) > 0.5).astype(jnp.float32)
    loss_r = jax.block_until_ready(power_dice(inputs_r, targets_r))
    ref_r = jax.block_until_ready(power_dice_ref(inputs_r, targets_r))
    assert jnp.allclose(loss_r, ref_r, rtol=1e-5, atol=1e-5), (loss_r, ref_r)

    print("KERNEL_OK")
</pallas_src>

<mosaic_0001>
module attributes {stable_mosaic.version = 11 : i64} {
  func.func @_powerdice_kernel(%arg0: i32, %arg1: memref<16x128xf32, #tpu.memory_space<vmem>>, %arg2: memref<16x128xf32, #tpu.memory_space<vmem>>, %arg3: memref<1x8x128xf32, #tpu.memory_space<vmem>>, %arg4: memref<1x8x128xf32, #tpu.memory_space<vmem>>) attributes {dimension_semantics = [#tpu.dimension_semantics<parallel>], iteration_bounds = array<i64: 1>, scalar_prefetch = 0 : i64, scratch_operands = 0 : i64, tpu.core_type = #tpu.core_type<tc>, window_params = [{transform_indices = @transform_0, window_bounds = array<i64: 16, 128>}, {transform_indices = @transform_1, window_bounds = array<i64: 16, 128>}, {transform_indices = @transform_2, window_bounds = array<i64: 1, 8, 128>}, {transform_indices = @transform_3, window_bounds = array<i64: 1, 8, 128>}]} {
    %c0 = arith.constant 0 : index
    %c0_0 = arith.constant 0 : index
    %0 = vector.load %arg1[%c0, %c0_0] : memref<16x128xf32, #tpu.memory_space<vmem>>, vector<16x128xf32>
    %c0_1 = arith.constant 0 : index
    %c0_2 = arith.constant 0 : index
    %1 = vector.load %arg2[%c0_1, %c0_2] : memref<16x128xf32, #tpu.memory_space<vmem>>, vector<16x128xf32>
    %2 = arith.addf %1, %0 : vector<16x128xf32>
    %3 = arith.mulf %1, %0 : vector<16x128xf32>
    %4 = vector.shape_cast %3 : vector<16x128xf32> to vector<1x16x128xf32>
    %cst = arith.constant dense<0.000000e+00> : vector<1xf32>
    %5 = vector.multi_reduction <add>, %4, %cst [1, 2] : vector<1x16x128xf32> to vector<1xf32>
    %6 = vector.shape_cast %5 : vector<1xf32> to vector<1x1x1xf32>
    %7 = vector.extract %6[0, 0, 0] : f32 from vector<1x1x1xf32>
    %8 = arith.mulf %2, %2 : vector<16x128xf32>
    %9 = vector.shape_cast %8 : vector<16x128xf32> to vector<1x16x128xf32>
    %cst_3 = arith.constant dense<0.000000e+00> : vector<1xf32>
    %10 = vector.multi_reduction <add>, %9, %cst_3 [1, 2] : vector<1x16x128xf32> to vector<1xf32>
    %11 = vector.shape_cast %10 : vector<1xf32> to vector<1x1x1xf32>
    %12 = vector.extract %11[0, 0, 0] : f32 from vector<1x1x1xf32>
    %13 = vector.broadcast %7 : f32 to vector<1x8x128xf32>
    %c0_4 = arith.constant 0 : index
    %c0_5 = arith.constant 0 : index
    %c0_6 = arith.constant 0 : index
    %14 = vector.load %arg3[%c0_4, %c0_5, %c0_6] : memref<1x8x128xf32, #tpu.memory_space<vmem>>, vector<1x8x128xf32>
    tpu.vector_store %arg3[%c0_4, %c0_5, %c0_6], %13 {strides = array<i32>} : memref<1x8x128xf32, #tpu.memory_space<vmem>>, vector<1x8x128xf32>,
    %15 = vector.broadcast %12 : f32 to vector<1x8x128xf32>
    %c0_7 = arith.constant 0 : index
    %c0_8 = arith.constant 0 : index
    %c0_9 = arith.constant 0 : index
    %16 = vector.load %arg4[%c0_7, %c0_8, %c0_9] : memref<1x8x128xf32, #tpu.memory_space<vmem>>, vector<1x8x128xf32>
    tpu.vector_store %arg4[%c0_7, %c0_8, %c0_9], %15 {strides = array<i32>} : memref<1x8x128xf32, #tpu.memory_space<vmem>>, vector<1x8x128xf32>,
    return
  }
  func.func @transform_0(%arg0: i32) -> (i32, i32) {
    %c0_i32 = arith.constant 0 : i32
    %c0_i32_0 = arith.constant 0 : i32
    return %arg0, %c0_i32 : i32, i32
  }
  func.func @transform_1(%arg0: i32) -> (i32, i32) {
    %c0_i32 = arith.constant 0 : i32
    %c0_i32_0 = arith.constant 0 : i32
    return %arg0, %c0_i32 : i32, i32
  }
  func.func @transform_2(%arg0: i32) -> (i32, i32, i32) {
    %c0_i32 = arith.constant 0 : i32
    %c0_i32_0 = arith.constant 0 : i32
    %c0_i32_1 = arith.constant 0 : i32
    return %arg0, %c0_i32, %c0_i32_0 : i32, i32, i32
  }
  func.func @transform_3(%arg0: i32) -> (i32, i32, i32) {
    %c0_i32 = arith.constant 0 : i32
    %c0_i32_0 = arith.constant 0 : i32
    %c0_i32_1 = arith.constant 0 : i32
    return %arg0, %c0_i32, %c0_i32_0 : i32, i32, i32
  }
}

</mosaic_0001>

<llo_original>
// kernel: tpu_custom_call.1
$region0: #{tpu_custom_call.1}
  #allocation0 [shape = 'u32[]', space=smem, size = 0x4, offset = 0x4, fixed_abs, tag = 'smem constant byte address 0x4 - core index']
  #allocation1 [shape = 'u32[144,128]{1,0:T(1,128)}', space=vmem, size = 0x12000, scoped, tag = 'internal scratch']
  %s0 = inlined_call_operand.hbm [shape: f32[16,128], index: 0, kind: input, shape index: {}]
  %s1 = inlined_call_operand.hbm [shape: f32[16,128], index: 1, kind: input, shape index: {}]
  %s2 = inlined_call_operand.hbm [shape: f32[1,8,128], index: 2, kind: output, shape index: {0}]
  %s3 = inlined_call_operand.hbm [shape: f32[1,8,128], index: 3, kind: output, shape index: {1}]
  %4 = xla_tuple %s2, %s3
  %s5 = sld [smem:[#allocation0]]
  $region34: #{tpu_custom_call.1} parent=0
    _
  %s7 = ssub.s32 1, %s5
  %s8 = scalar_select 0, %s7, %s5
  $region1: #{tpu_custom_call.1} parent=0
    #allocation2 [shape = 'u8[8192]{0}', space=vmem, size = 0x2000, scoped, tag = 'input window, operand 0, single buffered']
    #allocation3 [shape = 's32[1]{0}', space=sflag, size = 0x4, scoped, tag = 'scoped memory for tpu_custom_call.1']
    #allocation4 [shape = 's32[1]{0}', space=sflag, size = 0x4, scoped, tag = 'scoped memory for tpu_custom_call.1']
    #allocation5 [shape = 'u8[8192]{0}', space=vmem, size = 0x2000, scoped, tag = 'input window, operand 1, single buffered']
    #allocation6 [shape = 's32[1]{0}', space=sflag, size = 0x4, scoped, tag = 'scoped memory for tpu_custom_call.1']
    #allocation7 [shape = 'u8[4096]{0}', space=vmem, size = 0x1000, scoped, tag = 'output window, operand 0, single buffered']
    #allocation8 [shape = 'u8[4096]{0}', space=vmem, size = 0x1000, scoped, tag = 'output window, operand 1, single buffered']
    #allocation9 [shape = 's32[1]{0}', space=sflag, size = 0x4, scoped, tag = 'scoped memory for tpu_custom_call.1']
    %9 = vsyncpa [#allocation3], 0
    %10 = vsyncpa [#allocation6], 0
    %11 = vsyncpa [#allocation4], 0
    %12 = vsyncpa [#allocation9], 0
    // Predicated region
    $region2: #{tpu_custom_call.1} parent=1 // pred_check
      _
    $region3: #{tpu_custom_call.1} parent=1 // pred_check_branch
      %14 = sbr.rel (0) target = $region5
    $region4: #{tpu_custom_call.1} parent=1 // pred_region
      %s16 = ssub.s32 256, 256
      %17 = vsyncadd [#allocation3], %s16
      %s18 = sshll.u32 [#allocation2], 4
      %s19 = int_to_ptr.vmem [resolvable:$true] %s18
      %24 = dma.hbm_to_vmem [thread:$0]  %s0, 256, %s19, [#allocation3], 128, 128, 8
    $region5: #{tpu_custom_call.1} parent=1 // pred_fallthru
      _
    // Predicated region
    $region6: #{tpu_custom_call.1} parent=1 // pred_check
      _
    $region7: #{tpu_custom_call.1} parent=1 // pred_check_branch
      %26 = sbr.rel (0) target = $region9
    $region8: #{tpu_custom_call.1} parent=1 // pred_region
      %s28 = ssub.s32 256, 256
      %29 = vsyncadd [#allocation6], %s28
      %s30 = sshll.u32 [#allocation5], 4
      %s31 = int_to_ptr.vmem [resolvable:$true] %s30
      %36 = dma.hbm_to_vmem [thread:$0]  %s1, 256, %s31, [#allocation6], 128, 128, 8
    $region9: #{tpu_custom_call.1} parent=1 // pred_fallthru
      _
    // Predicated region
    $region10: #{tpu_custom_call.1} parent=1 // pred_check
      _
    $region11: #{tpu_custom_call.1} parent=1 // pred_check_branch
      %38 = sbr.rel (0) target = $region13
    $region12: #{tpu_custom_call.1} parent=1 // pred_region
      %39 = dma.done [#allocation3], 256
    $region13: #{tpu_custom_call.1} parent=1 // pred_fallthru
      _
    // Predicated region
    $region14: #{tpu_custom_call.1} parent=1 // pred_check
      _
    $region15: #{tpu_custom_call.1} parent=1 // pred_check_branch
      %41 = sbr.rel (0) target = $region17
    $region16: #{tpu_custom_call.1} parent=1 // pred_region
      %42 = dma.done [#allocation6], 256
    $region17: #{tpu_custom_call.1} parent=1 // pred_fallthru
      _
    %v43 = vld [vmem:[#allocation2] sm:$0xff]
    %v44 = vld [vmem:[#allocation2 + $0x8] sm:$0xff]
    %v45 = vld [vmem:[#allocation5] sm:$0xff]
    %v46 = vld [vmem:[#allocation5 + $0x8] sm:$0xff]
    %v47 = vadd.f32 %v45, %v43
    %v48 = vadd.f32 %v46, %v44
    %v49 = vmul.f32 %v45, %v43
    %v50 = vmul.f32 %v46, %v44
    %v51 = vadd.f32 %v49, %v50
    %52 = vadd.xlane.f32.xlu0 %v51
    %v53 = vpop.xlane.xlu0 %52
    %v54 = vrot.slane %v53, 4
    %v55 = vadd.f32 %v53, %v54
    %v56 = vrot.slane %v55, 2
    %v57 = vadd.f32 %v55, %v56
    %v58 = vrot.slane %v57, 1
    %v59 = vadd.f32 %v57, %v58
    %s60 = vtos %v59
    %v61 = vmul.f32 %v47, %v47
    %v62 = vmul.f32 %v48, %v48
    %v63 = vadd.f32 %v61, %v62
    %64 = vadd.xlane.f32.xlu0 %v63
    %v65 = vpop.xlane.xlu0 %64
    %v66 = vrot.slane %v65, 4
    %v67 = vadd.f32 %v65, %v66
    %v68 = vrot.slane %v67, 2
    %v69 = vadd.f32 %v67, %v68
    %v70 = vrot.slane %v69, 1
    %v71 = vadd.f32 %v69, %v70
    %s72 = vtos %v71
    %v73 = vstv %s60
    %74 = vst [vmem:[#allocation7] sm:$0xff] %v73
    %v75 = vstv %s72
    %76 = vst [vmem:[#allocation8] sm:$0xff] %v75
    // Predicated region
    $region18: #{tpu_custom_call.1} parent=1 // pred_check
      _
    $region19: #{tpu_custom_call.1} parent=1 // pred_check_branch
      %78 = sbr.rel (0) target = $region21
    $region20: #{tpu_custom_call.1} parent=1 // pred_region
      %s80 = ssub.s32 128, 128
      %81 = vsyncadd [#allocation4], %s80
      %s83 = sshll.u32 [#allocation7], 4
      %s84 = int_to_ptr.vmem [resolvable:$true] %s83
      %86 = dma.vmem_to_hbm [thread:$0]  %s84, 128, %s2, [#allocation4]
    $region21: #{tpu_custom_call.1} parent=1 // pred_fallthru
      _
    // Predicated region
    $region22: #{tpu_custom_call.1} parent=1 // pred_check
      _
    $region23: #{tpu_custom_call.1} parent=1 // pred_check_branch
      %88 = sbr.rel (0) target = $region25
    $region24: #{tpu_custom_call.1} parent=1 // pred_region
      %s90 = ssub.s32 128, 128
      %91 = vsyncadd [#allocation9], %s90
      %s93 = sshll.u32 [#allocation8], 4
      %s94 = int_to_ptr.vmem [resolvable:$true] %s93
      %96 = dma.vmem_to_hbm [thread:$0]  %s94, 128, %s3, [#allocation9]
    $region25: #{tpu_custom_call.1} parent=1 // pred_fallthru
      _
    // Predicated region
    $region26: #{tpu_custom_call.1} parent=1 // pred_check
      _
    $region27: #{tpu_custom_call.1} parent=1 // pred_check_branch
      %98 = sbr.rel (0) target = $region29
    $region28: #{tpu_custom_call.1} parent=1 // pred_region
      %99 = dma.done [#allocation4], 128
    $region29: #{tpu_custom_call.1} parent=1 // pred_fallthru
      _
    // Predicated region
    $region30: #{tpu_custom_call.1} parent=1 // pred_check
      _
    $region31: #{tpu_custom_call.1} parent=1 // pred_check_branch
      %101 = sbr.rel (0) target = $region33
    $region32: #{tpu_custom_call.1} parent=1 // pred_region
      %102 = dma.done [#allocation9], 128
    $region33: #{tpu_custom_call.1} parent=1 // pred_fallthru
      _
    %103 = vsyncpa [#allocation3], 1
    %104 = vsyncpa [#allocation6], 1
    %105 = vsyncpa [#allocation4], 1
    %106 = vsyncpa [#allocation9], 1

</llo_original>
